<compile_context>
chip_gen: v6e
topology: v6e:2x2x1
jax: 0.10.0
libtpu: 0.0.40
codegen_flags: <defaults>
</compile_context>

<pallas_src>
import jax
import jax.numpy as jnp
from jax import lax
from jax.experimental import pallas as pl
from jax.experimental.pallas import tpu as pltpu


def _round_up(x, m):
    return ((x + m - 1) // m) * m


def _device_vmem_bytes():
    try:
        info = pltpu.get_tpu_info()
        cap = int(getattr(info, "vmem_capacity_bytes", 0))
        if cap > 0:
            return cap
    except Exception:
        pass
    return 64 << 20  # conservative default (v7x per-TensorCore VMEM)


_VMEM_BYTES = _device_vmem_bytes()
_VMEM_LIMIT = int(0.9 * _VMEM_BYTES)     # never request more than the device has
_ONEHOT_MAX_VOCAB = 2048                 # one-hot MXU FLOPs stay cheap below this
_N_INFLIGHT = 8                          # HBM gather: DMAs in flight per tile


# --------------------------------------------------------------------------
# Path 1: small vocab, VMEM-resident table, one-hot MXU gather.
# --------------------------------------------------------------------------
def _onehot_kernel(idx_ref, table_ref, out_ref):
    # idx_ref:   (TILE_N, 1) int32 (VMEM block)
    # table_ref: (V, E) VMEM-resident (constant block index, single-buffered)
    # out_ref:   (TILE_N, E)
    idx = idx_ref[...]                                       # (TILE_N, 1)
    tile_n = out_ref.shape[0]
    v = table_ref.shape[0]
    iota = lax.broadcasted_iota(jnp.int32, (tile_n, v), 1)   # 2-D iota (TPU req.)
    one_hot = (iota == idx).astype(table_ref.dtype)          # exact 0/1 rows
    out_ref[...] = jnp.dot(
        one_hot, table_ref[...],
        preferred_element_type=jnp.float32,
        precision=jax.lax.Precision.HIGHEST,
    ).astype(out_ref.dtype)


def _lookup_onehot(idx, table, *, tile_n):
    n_pad = idx.shape[0]
    v, e = table.shape
    grid = (n_pad // tile_n,)
    return pl.pallas_call(
        _onehot_kernel,
        out_shape=jax.ShapeDtypeStruct((n_pad, e), table.dtype),
        grid=grid,
        in_specs=[
            pl.BlockSpec((tile_n, 1), lambda i: (i, 0)),
            # Full-extent block, constant index -> DMA'd once, VMEM-resident;
            # single-buffered so it does not occupy 2x the footprint.
            pl.BlockSpec((v, e), lambda i: (0, 0), pipeline_mode=pl.Buffered(1)),
        ],
        out_specs=pl.BlockSpec((tile_n, e), lambda i: (i, 0)),
        compiler_params=pltpu.CompilerParams(
            dimension_semantics=("parallel",),
            vmem_limit_bytes=_VMEM_LIMIT,
        ),
    )(idx.reshape(n_pad, 1), table)


# --------------------------------------------------------------------------
# Path 2: medium vocab, VMEM-resident table, grouped row copies.
# --------------------------------------------------------------------------
def _rowcopy_kernel(idx_ref, table_ref, out_ref):
    # idx_ref:   (N_pad,) int32 in SMEM (scalar prefetch)
    # table_ref: (V, E) VMEM-resident
    # out_ref:   (TILE_N, E)
    tile_n = out_ref.shape[0]
    base = pl.multiple_of(pl.program_id(0) * tile_n, 8)

    def group(g, carry):
        r0 = pl.multiple_of(g * 8, 8)
        # Batch the 8 SMEM index reads before issuing the copies.
        toks = [idx_ref[base + r0 + j] for j in range(8)]
        for j in range(8):
            out_ref[pl.ds(r0 + j, 1), :] = table_ref[pl.ds(toks[j], 1), :]
        return carry

    lax.fori_loop(0, tile_n // 8, group, 0, unroll=8)


def _lookup_rowcopy(idx, table, *, tile_n):
    n_pad = idx.shape[0]
    v, e = table.shape
    grid = (n_pad // tile_n,)
    return pl.pallas_call(
        _rowcopy_kernel,
        out_shape=jax.ShapeDtypeStruct((n_pad, e), table.dtype),
        grid_spec=pltpu.PrefetchScalarGridSpec(
            num_scalar_prefetch=1,
            grid=grid,
            in_specs=[pl.BlockSpec((v, e), lambda i, idx_p: (0, 0),
                                   pipeline_mode=pl.Buffered(1))],
            out_specs=pl.BlockSpec((tile_n, e), lambda i, idx_p: (i, 0)),
        ),
        compiler_params=pltpu.CompilerParams(
            dimension_semantics=("parallel",),
            vmem_limit_bytes=_VMEM_LIMIT,
        ),
    )(idx, table)


# --------------------------------------------------------------------------
# Path 3: large vocab, table stays in HBM, per-row DMA gather (ring of sems).
# --------------------------------------------------------------------------
def _hbm_gather_kernel(idx_ref, table_hbm, out_ref, sems):
    # idx_ref:   (N_pad,) int32 in SMEM (scalar prefetch)
    # table_hbm: (V, E) raw HBM ref
    # out_ref:   (TILE_N, E) VMEM output tile (DMA destination)
    # sems:      (_N_INFLIGHT,) DMA semaphores
    tile_n = out_ref.shape[0]
    base = pl.multiple_of(pl.program_id(0) * tile_n, 8)

    def _copy(r):
        tok = idx_ref[base + r]
        return pltpu.make_async_copy(
            table_hbm.at[pl.ds(tok, 1), :],
            out_ref.at[pl.ds(r, 1), :],
            sems.at[r % _N_INFLIGHT])

    @pl.loop(0, _N_INFLIGHT)                 # prime the pipeline
    def _(r):
        _copy(r).start()

    @pl.loop(0, tile_n - _N_INFLIGHT)        # steady state: wait r, start r+8
    def _(r):
        _copy(r).wait()
        _copy(r + _N_INFLIGHT).start()

    @pl.loop(tile_n - _N_INFLIGHT, tile_n)   # drain
    def _(r):
        _copy(r).wait()


def _lookup_hbm(idx, table, *, tile_n):
    n_pad = idx.shape[0]
    v, e = table.shape
    grid = (n_pad // tile_n,)
    return pl.pallas_call(
        _hbm_gather_kernel,
        out_shape=jax.ShapeDtypeStruct((n_pad, e), table.dtype),
        grid_spec=pltpu.PrefetchScalarGridSpec(
            num_scalar_prefetch=1,
            grid=grid,
            in_specs=[pl.BlockSpec(memory_space=pl.ANY)],   # table stays in HBM
            out_specs=pl.BlockSpec((tile_n, e), lambda i, idx_p: (i, 0)),
            scratch_shapes=[pltpu.SemaphoreType.DMA((_N_INFLIGHT,))],
        ),
        compiler_params=pltpu.CompilerParams(
            dimension_semantics=("parallel",),
            vmem_limit_bytes=_VMEM_LIMIT,
        ),
    )(idx, table)


# --------------------------------------------------------------------------
# Dispatcher.
# --------------------------------------------------------------------------
def pallas_embedding_lookup(idxs_flat, emb_table, *, tile_n=512, force_path=None):
    """out[i, :] = emb_table[idxs_flat[i], :]  (indices clamped to [0, V-1])."""
    n = int(idxs_flat.shape[0])
    v, e = int(emb_table.shape[0]), int(emb_table.shape[1])
    dtype = emb_table.dtype

    if n == 0:
        return jnp.zeros((0, e), dtype)

    idx = jnp.clip(jnp.asarray(idxs_flat, dtype=jnp.int32), 0, v - 1)

    # Token tiling (rows per grid step).
    tile_n = max(8, min(int(tile_n), _round_up(n, 8)))
    tile_n = _round_up(tile_n, 8)
    n_pad = _round_up(n, tile_n)
    if n_pad != n:
        idx = jnp.pad(idx, (0, n_pad - n))   # pad with valid index 0

    # VMEM footprint estimates (layout-padded), single-buffered table.
    itemsize = jnp.dtype(dtype).itemsize
    table_vmem = _round_up(v, 8) * _round_up(e, 128) * itemsize
    out_tile = tile_n * _round_up(e, 128) * itemsize
    onehot_tmp = 2 * tile_n * _round_up(v, 128) * 4      # one-hot + iota
    budget = int(0.8 * _VMEM_BYTES)
    fits_resident = table_vmem + 2 * out_tile + (2 << 20) <= budget
    fits_onehot = (fits_resident and
                   table_vmem + 2 * out_tile + onehot_tmp + (2 << 20) <= budget)

    if force_path is not None:
        path = force_path
    elif fits_onehot and v <= _ONEHOT_MAX_VOCAB:
        path = "onehot"
    elif fits_resident:
        path = "rowcopy"
    else:
        path = "hbm"

    if path == "onehot":
        out = _lookup_onehot(idx, emb_table, tile_n=tile_n)
    elif path == "rowcopy":
        out = _lookup_rowcopy(idx, emb_table, tile_n=tile_n)
    else:
        out = _lookup_hbm(idx, emb_table, tile_n=tile_n)

    return out[:n] if n_pad != n else out


class EmbeddingNN:
    """JAX/Pallas port of the PyTorch EmbeddingNN (forward == forward_i)."""

    def __init__(self, voc_size, emb_size=300, init_with=None, *, key=None):
        if key is None:
            key = jax.random.PRNGKey(0)
        self.voc_size = voc_size
        self.emb_size = emb_size
        k_i, k_o = jax.random.split(key)
        if init_with is not None:
            assert init_with.shape == (voc_size, emb_size)
            self.iembeddings = jnp.asarray(init_with, dtype=jnp.float32)
        else:
            # FloatTensor(...).uniform_(-1, 1)
            self.iembeddings = jax.random.uniform(
                k_i, (voc_size, emb_size), jnp.float32, minval=-1.0, maxval=1.0)
        self.oembeddings = jax.random.uniform(
            k_o, (voc_size, emb_size), jnp.float32, minval=-1.0, maxval=1.0)
        self._lookup_fn = jax.jit(pallas_embedding_lookup,
                                  static_argnames=("tile_n", "force_path"))

    def _lookup(self, table, data, force_path=None):
        idxs = jnp.asarray(data, dtype=jnp.int32)
        flat = idxs.reshape(-1)
        out_flat = self._lookup_fn(flat, table, force_path=force_path)
        return out_flat.reshape(idxs.shape + (self.emb_size,))

    def forward(self, data):
        return self.forward_i(data)

    def forward_i(self, data):
        return self._lookup(self.iembeddings, data)

    def forward_o(self, data):
        return self._lookup(self.oembeddings, data)

    def get_emb_dim(self):
        return self.emb_size


if __name__ == "__main__":
    key = jax.random.PRNGKey(0)
    k_model, k_model2, k_idx, k_idx2 = jax.random.split(key, 4)

    # Test 1: lane-aligned embedding dim -> one-hot MXU path.
    VOC, EMB = 50, 128
    B, S = 2, 8
    model = EmbeddingNN(VOC, emb_size=EMB, key=k_model)
    data = jax.random.randint(k_idx, (B, S), minval=0, maxval=VOC, dtype=jnp.int32)

    out_i = jax.block_until_ready(model.forward(data))
    ref_i = jnp.take(model.iembeddings, data, axis=0)
    assert out_i.shape == (B, S, EMB)
    assert out_i.dtype == jnp.float32
    assert jnp.allclose(out_i, ref_i, rtol=3e-5, atol=3e-5), "forward_i mismatch"

    out_o = jax.block_until_ready(model.forward_o(data))
    ref_o = jnp.take(model.oembeddings, data, axis=0)
    assert jnp.allclose(out_o, ref_o, rtol=3e-5, atol=3e-5), "forward_o mismatch"

    # Test 2: non-128 emb_size=300 and ragged token count (E unpadded output,
    # token-row padding path), still the one-hot path.
    model2 = EmbeddingNN(VOC, emb_size=300, key=k_model2)
    data2 = jax.random.randint(k_idx2, (3, 5), minval=0, maxval=VOC, dtype=jnp.int32)
    ref2 = jnp.take(model2.iembeddings, data2, axis=0)
    out2 = jax.block_until_ready(model2.forward(data2))
    assert out2.shape == (3, 5, 300)
    assert jnp.allclose(out2, ref2, rtol=3e-5, atol=3e-5), "one-hot path mismatch"

    # Test 3: forced medium-vocab resident row-copy path (exact copies).
    out3 = jax.block_until_ready(
        model2._lookup(model2.iembeddings, data2, force_path="rowcopy"))
    assert jnp.array_equal(out3, ref2), "rowcopy path mismatch"

    # Test 4: forced HBM DMA-gather path (exact copies).
    out4 = jax.block_until_ready(
        model2._lookup(model2.iembeddings, data2, force_path="hbm"))
    assert jnp.array_equal(out4, ref2), "hbm gather path mismatch"

    print("KERNEL_OK")
</pallas_src>

<mosaic_0001>
module attributes {stable_mosaic.version = 11 : i64} {
  func.func @_onehot_kernel(%arg0: i32, %arg1: memref<16x1xi32, #tpu.memory_space<vmem>>, %arg2: memref<50x128xf32, #tpu.memory_space<vmem>>, %arg3: memref<16x128xf32, #tpu.memory_space<vmem>>) attributes {dimension_semantics = [#tpu.dimension_semantics<parallel>], iteration_bounds = array<i64: 1>, scalar_prefetch = 0 : i64, scratch_operands = 0 : i64, tpu.core_type = #tpu.core_type<tc>, window_params = [{transform_indices = @transform_0, window_bounds = array<i64: 16, 1>}, {pipeline_mode = #tpu.pipeline_mode<synchronous>, transform_indices = @transform_1, window_bounds = array<i64: 50, 128>}, {transform_indices = @transform_2, window_bounds = array<i64: 16, 128>}]} {
    %c0 = arith.constant 0 : index
    %c0_0 = arith.constant 0 : index
    %0 = vector.load %arg1[%c0, %c0_0] : memref<16x1xi32, #tpu.memory_space<vmem>>, vector<16x1xi32>
    %1 = tpu.iota {dimensions = array<i32: 1>} : vector<16x50xi32>
    %2 = vector.broadcast %0 : vector<16x1xi32> to vector<16x50xi32>
    %3 = arith.cmpi eq, %1, %2 : vector<16x50xi32>
    %4 = arith.extui %3 : vector<16x50xi1> to vector<16x50xi32>
    %5 = arith.sitofp %4 : vector<16x50xi32> to vector<16x50xf32>
    %c0_1 = arith.constant 0 : index
    %c0_2 = arith.constant 0 : index
    %6 = vector.load %arg2[%c0_1, %c0_2] : memref<50x128xf32, #tpu.memory_space<vmem>>, vector<50x128xf32>
    %cst = arith.constant dense<0.000000e+00> : vector<16x128xf32>
    %7 = tpu.matmul %5, %6, %cst {dimension_numbers = #tpu.dot_dimension_numbers<[1], [0], [0], [1], [0, 0, 1, 1], [], []>, precision = #tpu.contract_precision<fp32>} : vector<16x50xf32>, vector<50x128xf32>, vector<16x128xf32> -> vector<16x128xf32>
    %c0_3 = arith.constant 0 : index
    %c0_4 = arith.constant 0 : index
    %8 = vector.load %arg3[%c0_3, %c0_4] : memref<16x128xf32, #tpu.memory_space<vmem>>, vector<16x128xf32>
    tpu.vector_store %arg3[%c0_3, %c0_4], %7 {strides = array<i32>} : memref<16x128xf32, #tpu.memory_space<vmem>>, vector<16x128xf32>,
    return
  }
  func.func @transform_0(%arg0: i32) -> (i32, i32) {
    %c0_i32 = arith.constant 0 : i32
    %c0_i32_0 = arith.constant 0 : i32
    return %arg0, %c0_i32 : i32, i32
  }
  func.func @transform_1(%arg0: i32) -> (i32, i32) {
    %c0_i32 = arith.constant 0 : i32
    %c0_i32_0 = arith.constant 0 : i32
    %c0_i32_1 = arith.constant 0 : i32
    return %c0_i32, %c0_i32_0 : i32, i32
  }
  func.func @transform_2(%arg0: i32) -> (i32, i32) {
    %c0_i32 = arith.constant 0 : i32
    %c0_i32_0 = arith.constant 0 : i32
    return %arg0, %c0_i32 : i32, i32
  }
}

</mosaic_0001>

<llo_original>
// kernel: pallas_embedding_lookup.1
$region0: #{pallas_embedding_lookup.1}
  #allocation0 [shape = 'u32[]', space=smem, size = 0x4, offset = 0x4, fixed_abs, tag = 'smem constant byte address 0x4 - core index']
  #allocation1 [shape = 'u32[144,128]{1,0:T(1,128)}', space=vmem, size = 0x12000, scoped, tag = 'internal scratch']
  %s0 = inlined_call_operand.vmem [shape: s32[16,1], index: 0, kind: input, shape index: {}]
  %s1 = inlined_call_operand.hbm [shape: f32[50,128], index: 1, kind: input, shape index: {}]
  %s2 = inlined_call_operand.hbm [shape: f32[16,128], index: 2, kind: output, shape index: {}]
  %s3 = sld [smem:[#allocation0]]
  $region22: #{pallas_embedding_lookup.1} parent=0
    _
  %s5 = ssub.s32 1, %s3
  %s6 = scalar_select 0, %s5, %s3
  $region1: #{pallas_embedding_lookup.1} parent=0
    #allocation2 [shape = 'u8[28672]{0}', space=vmem, size = 0x7000, scoped, tag = 'input window, operand 1, single buffered']
    #allocation3 [shape = 's32[1]{0}', space=sflag, size = 0x4, scoped, tag = 'scoped memory for pallas_embedding_lookup.1']
    #allocation4 [shape = 's32[1]{0}', space=sflag, size = 0x4, scoped, tag = 'scoped memory for pallas_embedding_lookup.1']
    #allocation5 [shape = 'u8[8192]{0}', space=vmem, size = 0x2000, scoped, tag = 'output window, operand 0, single buffered']
    %7 = vsyncpa [#allocation3], 0
    %8 = vsyncpa [#allocation4], 0
    // Predicated region
    $region2: #{pallas_embedding_lookup.1} parent=1 // pred_check
      _
    $region3: #{pallas_embedding_lookup.1} parent=1 // pred_check_branch
      %10 = sbr.rel (0) target = $region5
    $region4: #{pallas_embedding_lookup.1} parent=1 // pred_region
      _
    $region5: #{pallas_embedding_lookup.1} parent=1 // pred_fallthru
      _
    // Predicated region
    $region6: #{pallas_embedding_lookup.1} parent=1 // pred_check
      _
    $region7: #{pallas_embedding_lookup.1} parent=1 // pred_check_branch
      %12 = sbr.rel (0) target = $region9
    $region8: #{pallas_embedding_lookup.1} parent=1 // pred_region
      %s14 = ssub.s32 896, 896
      %15 = vsyncadd [#allocation3], %s14
      %s16 = sshll.u32 [#allocation2], 4
      %s17 = int_to_ptr.vmem [resolvable:$true] %s16
      %22 = dma.hbm_to_vmem [thread:$0]  %s1, 896, %s17, [#allocation3], 128, 128, 8
    $region9: #{pallas_embedding_lookup.1} parent=1 // pred_fallthru
      _
    // Predicated region
    $region10: #{pallas_embedding_lookup.1} parent=1 // pred_check
      _
    $region11: #{pallas_embedding_lookup.1} parent=1 // pred_check_branch
      %24 = sbr.rel (0) target = $region13
    $region12: #{pallas_embedding_lookup.1} parent=1 // pred_region
      %25 = dma.done [#allocation3], 896
    $region13: #{pallas_embedding_lookup.1} parent=1 // pred_fallthru
      _
    %v26 = vld [vmem:[%s0] sm:$0xff]
    %v27 = vld [vmem:[%s0 + $0x8] sm:$0xff]
    %v28 = vlaneseq
    %v29 = vand.u32 %v28, 127
    %30 = vset.pattern.permute.xlu0 0
    %31 = vperm.xlu0 %30, %v26
    %v32 = vpop.permute.xlu0 %31
    %33 = vset.pattern.permute.xlu0 0
    %34 = vperm.xlu0 %33, %v27
    %v35 = vpop.permute.xlu0 %34
    %vm36 = vcmp.eq.s32.totalorder %v29, %v32
    %vm37 = vcmp.eq.s32.totalorder %v29, %v35
    %v38 = vsel %vm36, 1, 0
    %v39 = vsel %vm37, 1, 0
    %v40 = vcvt.s32.f32 %v38
    %v41 = vcvt.s32.f32 %v39
    %v42 = vld [vmem:[#allocation2] sm:$0xff]
    %v43 = vld [vmem:[#allocation2 + $0x8] sm:$0xff]
    %v44 = vld [vmem:[#allocation2 + $0x10] sm:$0xff]
    %v45 = vld [vmem:[#allocation2 + $0x18] sm:$0xff]
    %v46 = vld [vmem:[#allocation2 + $0x20] sm:$0xff]
    %v47 = vld [vmem:[#allocation2 + $0x28] sm:$0xff]
    %v48 = vld [vmem:[#allocation2 + $0x30] sm:$0x3]
    %vm49 = vcmask 408576
    %v51 = vsel %vm49, %v40, 0
    %v54 = vsel %vm49, %v41, 0
    %vm56 = vcmask 1041408
    %v58 = vsel %vm56, %v48, 0
    %60 = vmatprep.subr.mxu0 0.0
    %61 = vmatpush1.msra.mxu0 0.0
    %62 = vmatprep.subr.mxu0 0.0
    %63 = vmatpush1.msra.mxu0 0.0
    %64 = vmatprep.subr.mxu0 0.0
    %65 = vmatpush1.msra.mxu0 0.0
    %66 = vmatprep.subr.mxu0 0.0
    %67 = vmatpush1.msra.mxu0 0.0
    %68 = vmatprep.subr.mxu0 0.0
    %69 = vmatpush1.msra.mxu0 0.0
    %70 = vmatprep.subr.mxu0 0.0
    %71 = vmatpush1.msra.mxu0 0.0
    %72 = vmatprep.subr.mxu0 0.0
    %73 = vmatpush1.msra.mxu0 0.0
    %74 = vmatprep.subr.mxu0 0.0
    %75 = vmatpush1.msra.mxu0 0.0
    %76 = vmatprep.subr.mxu0 0.0
    %77 = vmatpush1.msra.mxu0 0.0
    %78 = vmatprep.subr.mxu0 0.0
    %v79 = vand.u32 %v58, 4294901760
    %80 = vmatpush1.msra.mxu0 %v79
    %81 = vmatprep.subr.mxu0 0.0
    %v82 = vand.u32 %v47, 4294901760
    %83 = vmatpush1.msra.mxu0 %v82
    %84 = vmatprep.subr.mxu0 0.0
    %v85 = vand.u32 %v46, 4294901760
    %86 = vmatpush1.msra.mxu0 %v85
    %87 = vmatprep.subr.mxu0 0.0
    %v88 = vand.u32 %v45, 4294901760
    %89 = vmatpush1.msra.mxu0 %v88
    %90 = vmatprep.subr.mxu0 0.0
    %v91 = vand.u32 %v44, 4294901760
    %92 = vmatpush1.msra.mxu0 %v91
    %93 = vmatprep.subr.mxu0 0.0
    %v94 = vand.u32 %v43, 4294901760
    %95 = vmatpush1.msra.mxu0 %v94
    %96 = vmatprep.subr.mxu0 0.0
    %v97 = vand.u32 %v42, 4294901760
    %98 = vmatpush1.msra.mxu0 %v97
    %99 = vmatprep.subr.mxu0 0.0
    %100 = vmatpush2.msra.mxu0 0.0
    %101 = vmatprep.subr.mxu0 0.0
    %102 = vmatpush2.msra.mxu0 0.0
    %103 = vmatprep.subr.mxu0 0.0
    %104 = vmatpush2.msra.mxu0 0.0
    %105 = vmatprep.subr.mxu0 0.0
    %106 = vmatpush2.msra.mxu0 0.0
    %107 = vmatprep.subr.mxu0 0.0
    %108 = vmatpush2.msra.mxu0 0.0
    %109 = vmatprep.subr.mxu0 0.0
    %110 = vmatpush2.msra.mxu0 0.0
    %111 = vmatprep.subr.mxu0 0.0
    %112 = vmatpush2.msra.mxu0 0.0
    %113 = vmatprep.subr.mxu0 0.0
    %114 = vmatpush2.msra.mxu0 0.0
    %115 = vmatprep.subr.mxu0 0.0
    %116 = vmatpush2.msra.mxu0 0.0
    %117 = vmatprep.subr.mxu0 0.0
    %118 = vmatpush2.msra.mxu0 0.0
    %119 = vmatprep.subr.mxu0 0.0
    %120 = vmatpush2.msra.mxu0 0.0
    %121 = vmatprep.subr.mxu0 0.0
    %122 = vmatpush2.msra.mxu0 0.0
    %123 = vmatprep.subr.mxu0 0.0
    %124 = vmatpush2.msra.mxu0 0.0
    %125 = vmatprep.subr.mxu0 0.0
    %126 = vmatpush2.msra.mxu0 0.0
    %127 = vmatprep.subr.mxu0 0.0
    %128 = vmatpush2.msra.mxu0 0.0
    %129 = vmatprep.subr.mxu0 0.0
    %130 = vmatpush2.msra.mxu0 0.0
    %131 = vmatprep.mubr.f32.mxu0 0.0
    %v132 = vand.u32 %v51, 4294901760
    %v133 = vsub.f32 %v51, %v132
    %v134 = vand.u32 %v133, 4294901760
    %v135 = vsub.f32 %v133, %v134
    %v136 = vand.u32 %v135, 4294901760
    %137 = vmatmul.mubr.f32.gmra.mxu0 %v136
    %v138 = vpop.f32.mrf.mxu0
    %v139 = vadd.f32 0.0, %v138
    %v140 = vpop.f32.mrf.mxu0
    %141 = vmatprep.mubr.f32.mxu0 0.0
    %v142 = vand.u32 %v54, 4294901760
    %v143 = vsub.f32 %v54, %v142
    %v144 = vand.u32 %v143, 4294901760
    %v145 = vsub.f32 %v143, %v144
    %v146 = vand.u32 %v145, 4294901760
    %147 = vmatmul.mubr.f32.gmra.mxu0 %v146
    %v148 = vpop.f32.mrf.mxu0
    %v149 = vadd.f32 0.0, %v148
    %v150 = vpop.f32.mrf.mxu0
    %151 = vdwg.mxu0
    %152 = vmatprep.subr.mxu0 0.0
    %153 = vmatpush1.msra.mxu0 0.0
    %154 = vmatprep.subr.mxu0 0.0
    %155 = vmatpush1.msra.mxu0 0.0
    %156 = vmatprep.subr.mxu0 0.0
    %157 = vmatpush1.msra.mxu0 0.0
    %158 = vmatprep.subr.mxu0 0.0
    %159 = vmatpush1.msra.mxu0 0.0
    %160 = vmatprep.subr.mxu0 0.0
    %161 = vmatpush1.msra.mxu0 0.0
    %162 = vmatprep.subr.mxu0 0.0
    %163 = vmatpush1.msra.mxu0 0.0
    %164 = vmatprep.subr.mxu0 0.0
    %165 = vmatpush1.msra.mxu0 0.0
    %166 = vmatprep.subr.mxu0 0.0
    %167 = vmatpush1.msra.mxu0 0.0
    %168 = vmatprep.subr.mxu0 0.0
    %169 = vmatpush1.msra.mxu0 0.0
    %170 = vmatprep.subr.mxu0 0.0
    %v171 = vand.u32 %v58, 4294901760
    %v172 = vsub.f32 %v58, %v171
    %v173 = vand.u32 %v172, 4294901760
    %v174 = vsub.f32 %v172, %v173
    %v175 = vand.u32 %v174, 4294901760
    %176 = vmatpush1.msra.mxu0 %v175
    %177 = vmatprep.subr.mxu0 0.0
    %v178 = vand.u32 %v47, 4294901760
    %v179 = vsub.f32 %v47, %v178
    %v180 = vand.u32 %v179, 4294901760
    %v181 = vsub.f32 %v179, %v180
    %v182 = vand.u32 %v181, 4294901760
    %183 = vmatpush1.msra.mxu0 %v182
    %184 = vmatprep.subr.mxu0 0.0
    %v185 = vand.u32 %v46, 4294901760
    %v186 = vsub.f32 %v46, %v185
    %v187 = vand.u32 %v186, 4294901760
    %v188 = vsub.f32 %v186, %v187
    %v189 = vand.u32 %v188, 4294901760
    %190 = vmatpush1.msra.mxu0 %v189
    %191 = vmatprep.subr.mxu0 0.0
    %v192 = vand.u32 %v45, 4294901760
    %v193 = vsub.f32 %v45, %v192
    %v194 = vand.u32 %v193, 4294901760
    %v195 = vsub.f32 %v193, %v194
    %v196 = vand.u32 %v195, 4294901760
    %197 = vmatpush1.msra.mxu0 %v196
    %198 = vmatprep.subr.mxu0 0.0
    %v199 = vand.u32 %v44, 4294901760
    %v200 = vsub.f32 %v44, %v199
    %v201 = vand.u32 %v200, 4294901760
    %v202 = vsub.f32 %v200, %v201
    %v203 = vand.u32 %v202, 4294901760
    %204 = vmatpush1.msra.mxu0 %v203
    %205 = vmatprep.subr.mxu0 0.0
    %v206 = vand.u32 %v43, 4294901760
    %v207 = vsub.f32 %v43, %v206
    %v208 = vand.u32 %v207, 4294901760
    %v209 = vsub.f32 %v207, %v208
    %v210 = vand.u32 %v209, 4294901760
    %211 = vmatpush1.msra.mxu0 %v210
    %212 = vmatprep.subr.mxu0 0.0
    %v213 = vand.u32 %v42, 4294901760
    %v214 = vsub.f32 %v42, %v213
    %v215 = vand.u32 %v214, 4294901760
    %v216 = vsub.f32 %v214, %v215
    %v217 = vand.u32 %v216, 4294901760
    %218 = vmatpush1.msra.mxu0 %v217
    %219 = vmatprep.subr.mxu0 0.0
    %220 = vmatpush2.msra.mxu0 0.0
    %221 = vmatprep.subr.mxu0 0.0
    %222 = vmatpush2.msra.mxu0 0.0
    %223 = vmatprep.subr.mxu0 0.0
    %224 = vmatpush2.msra.mxu0 0.0
    %225 = vmatprep.subr.mxu0 0.0
    %226 = vmatpush2.msra.mxu0 0.0
    %227 = vmatprep.subr.mxu0 0.0
    %228 = vmatpush2.msra.mxu0 0.0
    %229 = vmatprep.subr.mxu0 0.0
    %230 = vmatpush2.msra.mxu0 0.0
    %231 = vmatprep.subr.mxu0 0.0
    %232 = vmatpush2.msra.mxu0 0.0
    %233 = vmatprep.subr.mxu0 0.0
    %234 = vmatpush2.msra.mxu0 0.0
    %235 = vmatprep.subr.mxu0 0.0
    %236 = vmatpush2.msra.mxu0 0.0
    %237 = vmatprep.subr.mxu0 0.0
    %238 = vmatpush2.msra.mxu0 0.0
    %239 = vmatprep.subr.mxu0 0.0
    %240 = vmatpush2.msra.mxu0 0.0
    %241 = vmatprep.subr.mxu0 0.0
    %242 = vmatpush2.msra.mxu0 0.0
    %243 = vmatprep.subr.mxu0 0.0
    %244 = vmatpush2.msra.mxu0 0.0
    %245 = vmatprep.subr.mxu0 0.0
    %246 = vmatpush2.msra.mxu0 0.0
    %247 = vmatprep.subr.mxu0 0.0
    %248 = vmatpush2.msra.mxu0 0.0
    %249 = vmatprep.subr.mxu0 0.0
    %250 = vmatpush2.msra.mxu0 0.0
    %251 = vmatprep.mubr.f32.mxu0 0.0
    %v252 = vand.u32 %v51, 4294901760
    %253 = vmatmul.mubr.f32.gmra.mxu0 %v252
    %v254 = vpop.f32.mrf.mxu0
    %v255 = vadd.f32 %v139, %v254
    %v256 = vpop.f32.mrf.mxu0
    %257 = vmatprep.mubr.f32.mxu0 0.0
    %v258 = vand.u32 %v54, 4294901760
    %259 = vmatmul.mubr.f32.gmra.mxu0 %v258
    %v260 = vpop.f32.mrf.mxu0
    %v261 = vadd.f32 %v149, %v260
    %v262 = vpop.f32.mrf.mxu0
    %263 = vdwg.mxu0
    %264 = vmatprep.subr.mxu0 0.0
    %265 = vmatpush1.msra.mxu0 0.0
    %266 = vmatprep.subr.mxu0 0.0
    %267 = vmatpush1.msra.mxu0 0.0
    %268 = vmatprep.subr.mxu0 0.0
    %269 = vmatpush1.msra.mxu0 0.0
    %270 = vmatprep.subr.mxu0 0.0
    %271 = vmatpush1.msra.mxu0 0.0
    %272 = vmatprep.subr.mxu0 0.0
    %273 = vmatpush1.msra.mxu0 0.0
    %274 = vmatprep.subr.mxu0 0.0
    %275 = vmatpush1.msra.mxu0 0.0
    %276 = vmatprep.subr.mxu0 0.0
    %277 = vmatpush1.msra.mxu0 0.0
    %278 = vmatprep.subr.mxu0 0.0
    %279 = vmatpush1.msra.mxu0 0.0
    %280 = vmatprep.subr.mxu0 0.0
    %281 = vmatpush1.msra.mxu0 0.0
    %282 = vmatprep.subr.mxu0 0.0
    %v283 = vand.u32 %v58, 4294901760
    %v284 = vsub.f32 %v58, %v283
    %285 = vmatpush1.msra.mxu0 %v284
    %286 = vmatprep.subr.mxu0 0.0
    %v287 = vand.u32 %v47, 4294901760
    %v288 = vsub.f32 %v47, %v287
    %289 = vmatpush1.msra.mxu0 %v288
    %290 = vmatprep.subr.mxu0 0.0
    %v291 = vand.u32 %v46, 4294901760
    %v292 = vsub.f32 %v46, %v291
    %293 = vmatpush1.msra.mxu0 %v292
    %294 = vmatprep.subr.mxu0 0.0
    %v295 = vand.u32 %v45, 4294901760
    %v296 = vsub.f32 %v45, %v295
    %297 = vmatpush1.msra.mxu0 %v296
    %298 = vmatprep.subr.mxu0 0.0
    %v299 = vand.u32 %v44, 4294901760
    %v300 = vsub.f32 %v44, %v299
    %301 = vmatpush1.msra.mxu0 %v300
    %302 = vmatprep.subr.mxu0 0.0
    %v303 = vand.u32 %v43, 4294901760
    %v304 = vsub.f32 %v43, %v303
    %305 = vmatpush1.msra.mxu0 %v304
    %306 = vmatprep.subr.mxu0 0.0
    %v307 = vand.u32 %v42, 4294901760
    %v308 = vsub.f32 %v42, %v307
    %309 = vmatpush1.msra.mxu0 %v308
    %310 = vmatprep.subr.mxu0 0.0
    %311 = vmatpush2.msra.mxu0 0.0
    %312 = vmatprep.subr.mxu0 0.0
    %313 = vmatpush2.msra.mxu0 0.0
    %314 = vmatprep.subr.mxu0 0.0
    %315 = vmatpush2.msra.mxu0 0.0
    %316 = vmatprep.subr.mxu0 0.0
    %317 = vmatpush2.msra.mxu0 0.0
    %318 = vmatprep.subr.mxu0 0.0
    %319 = vmatpush2.msra.mxu0 0.0
    %320 = vmatprep.subr.mxu0 0.0
    %321 = vmatpush2.msra.mxu0 0.0
    %322 = vmatprep.subr.mxu0 0.0
    %323 = vmatpush2.msra.mxu0 0.0
    %324 = vmatprep.subr.mxu0 0.0
    %325 = vmatpush2.msra.mxu0 0.0
    %326 = vmatprep.subr.mxu0 0.0
    %327 = vmatpush2.msra.mxu0 0.0
    %328 = vmatprep.subr.mxu0 0.0
    %329 = vmatpush2.msra.mxu0 0.0
    %330 = vmatprep.subr.mxu0 0.0
    %331 = vmatpush2.msra.mxu0 0.0
    %332 = vmatprep.subr.mxu0 0.0
    %333 = vmatpush2.msra.mxu0 0.0
    %334 = vmatprep.subr.mxu0 0.0
    %335 = vmatpush2.msra.mxu0 0.0
    %336 = vmatprep.subr.mxu0 0.0
    %337 = vmatpush2.msra.mxu0 0.0
    %338 = vmatprep.subr.mxu0 0.0
    %339 = vmatpush2.msra.mxu0 0.0
    %340 = vmatprep.subr.mxu0 0.0
    %341 = vmatpush2.msra.mxu0 0.0
    %342 = vmatprep.mubr.f32.mxu0 0.0
    %v343 = vand.u32 %v51, 4294901760
    %v344 = vsub.f32 %v51, %v343
    %345 = vmatmul.mubr.f32.gmra.mxu0 %v344
    %v346 = vpop.f32.mrf.mxu0
    %v347 = vadd.f32 %v255, %v346
    %v348 = vpop.f32.mrf.mxu0
    %349 = vmatprep.mubr.f32.mxu0 0.0
    %v350 = vand.u32 %v54, 4294901760
    %v351 = vsub.f32 %v54, %v350
    %352 = vmatmul.mubr.f32.gmra.mxu0 %v351
    %v353 = vpop.f32.mrf.mxu0
    %v354 = vadd.f32 %v261, %v353
    %v355 = vpop.f32.mrf.mxu0
    %356 = vdwg.mxu0
    %357 = vmatprep.subr.mxu0 0.0
    %358 = vmatpush1.msra.mxu0 0.0
    %359 = vmatprep.subr.mxu0 0.0
    %360 = vmatpush1.msra.mxu0 0.0
    %361 = vmatprep.subr.mxu0 0.0
    %362 = vmatpush1.msra.mxu0 0.0
    %363 = vmatprep.subr.mxu0 0.0
    %364 = vmatpush1.msra.mxu0 0.0
    %365 = vmatprep.subr.mxu0 0.0
    %366 = vmatpush1.msra.mxu0 0.0
    %367 = vmatprep.subr.mxu0 0.0
    %368 = vmatpush1.msra.mxu0 0.0
    %369 = vmatprep.subr.mxu0 0.0
    %370 = vmatpush1.msra.mxu0 0.0
    %371 = vmatprep.subr.mxu0 0.0
    %372 = vmatpush1.msra.mxu0 0.0
    %373 = vmatprep.subr.mxu0 0.0
    %374 = vmatpush1.msra.mxu0 0.0
    %375 = vmatprep.subr.mxu0 0.0
    %v376 = vand.u32 %v58, 4294901760
    %377 = vmatpush1.msra.mxu0 %v376
    %378 = vmatprep.subr.mxu0 0.0
    %v379 = vand.u32 %v47, 4294901760
    %380 = vmatpush1.msra.mxu0 %v379
    %381 = vmatprep.subr.mxu0 0.0
    %v382 = vand.u32 %v46, 4294901760
    %383 = vmatpush1.msra.mxu0 %v382
    %384 = vmatprep.subr.mxu0 0.0
    %v385 = vand.u32 %v45, 4294901760
    %386 = vmatpush1.msra.mxu0 %v385
    %387 = vmatprep.subr.mxu0 0.0
    %v388 = vand.u32 %v44, 4294901760
    %389 = vmatpush1.msra.mxu0 %v388
    %390 = vmatprep.subr.mxu0 0.0
    %v391 = vand.u32 %v43, 4294901760
    %392 = vmatpush1.msra.mxu0 %v391
    %393 = vmatprep.subr.mxu0 0.0
    %v394 = vand.u32 %v42, 4294901760
    %395 = vmatpush1.msra.mxu0 %v394
    %396 = vmatprep.subr.mxu0 0.0
    %397 = vmatpush2.msra.mxu0 0.0
    %398 = vmatprep.subr.mxu0 0.0
    %399 = vmatpush2.msra.mxu0 0.0
    %400 = vmatprep.subr.mxu0 0.0
    %401 = vmatpush2.msra.mxu0 0.0
    %402 = vmatprep.subr.mxu0 0.0
    %403 = vmatpush2.msra.mxu0 0.0
    %404 = vmatprep.subr.mxu0 0.0
    %405 = vmatpush2.msra.mxu0 0.0
    %406 = vmatprep.subr.mxu0 0.0
    %407 = vmatpush2.msra.mxu0 0.0
    %408 = vmatprep.subr.mxu0 0.0
    %409 = vmatpush2.msra.mxu0 0.0
    %410 = vmatprep.subr.mxu0 0.0
    %411 = vmatpush2.msra.mxu0 0.0
    %412 = vmatprep.subr.mxu0 0.0
    %413 = vmatpush2.msra.mxu0 0.0
    %414 = vmatprep.subr.mxu0 0.0
    %415 = vmatpush2.msra.mxu0 0.0
    %416 = vmatprep.subr.mxu0 0.0
    %417 = vmatpush2.msra.mxu0 0.0
    %418 = vmatprep.subr.mxu0 0.0
    %419 = vmatpush2.msra.mxu0 0.0
    %420 = vmatprep.subr.mxu0 0.0
    %421 = vmatpush2.msra.mxu0 0.0
    %422 = vmatprep.subr.mxu0 0.0
    %423 = vmatpush2.msra.mxu0 0.0
    %424 = vmatprep.subr.mxu0 0.0
    %425 = vmatpush2.msra.mxu0 0.0
    %426 = vmatprep.subr.mxu0 0.0
    %427 = vmatpush2.msra.mxu0 0.0
    %428 = vmatprep.mubr.f32.mxu0 0.0
    %v429 = vand.u32 %v51, 4294901760
    %v430 = vsub.f32 %v51, %v429
    %v431 = vand.u32 %v430, 4294901760
    %432 = vmatmul.mubr.f32.gmra.mxu0 %v431
    %v433 = vpop.f32.mrf.mxu0
    %v434 = vadd.f32 %v347, %v433
    %v435 = vpop.f32.mrf.mxu0
    %436 = vmatprep.mubr.f32.mxu0 0.0
    %v437 = vand.u32 %v54, 4294901760
    %v438 = vsub.f32 %v54, %v437
    %v439 = vand.u32 %v438, 4294901760
    %440 = vmatmul.mubr.f32.gmra.mxu0 %v439
    %v441 = vpop.f32.mrf.mxu0
    %v442 = vadd.f32 %v354, %v441
    %v443 = vpop.f32.mrf.mxu0
    %444 = vdwg.mxu0
    %445 = vmatprep.subr.mxu0 0.0
    %446 = vmatpush1.msra.mxu0 0.0
    %447 = vmatprep.subr.mxu0 0.0
    %448 = vmatpush1.msra.mxu0 0.0
    %449 = vmatprep.subr.mxu0 0.0
    %450 = vmatpush1.msra.mxu0 0.0
    %451 = vmatprep.subr.mxu0 0.0
    %452 = vmatpush1.msra.mxu0 0.0
    %453 = vmatprep.subr.mxu0 0.0
    %454 = vmatpush1.msra.mxu0 0.0
    %455 = vmatprep.subr.mxu0 0.0
    %456 = vmatpush1.msra.mxu0 0.0
    %457 = vmatprep.subr.mxu0 0.0
    %458 = vmatpush1.msra.mxu0 0.0
    %459 = vmatprep.subr.mxu0 0.0
    %460 = vmatpush1.msra.mxu0 0.0
    %461 = vmatprep.subr.mxu0 0.0
    %462 = vmatpush1.msra.mxu0 0.0
    %463 = vmatprep.subr.mxu0 0.0
    %v464 = vand.u32 %v58, 4294901760
    %v465 = vsub.f32 %v58, %v464
    %v466 = vand.u32 %v465, 4294901760
    %467 = vmatpush1.msra.mxu0 %v466
    %468 = vmatprep.subr.mxu0 0.0
    %v469 = vand.u32 %v47, 4294901760
    %v470 = vsub.f32 %v47, %v469
    %v471 = vand.u32 %v470, 4294901760
    %472 = vmatpush1.msra.mxu0 %v471
    %473 = vmatprep.subr.mxu0 0.0
    %v474 = vand.u32 %v46, 4294901760
    %v475 = vsub.f32 %v46, %v474
    %v476 = vand.u32 %v475, 4294901760
    %477 = vmatpush1.msra.mxu0 %v476
    %478 = vmatprep.subr.mxu0 0.0
    %v479 = vand.u32 %v45, 4294901760
    %v480 = vsub.f32 %v45, %v479
    %v481 = vand.u32 %v480, 4294901760
    %482 = vmatpush1.msra.mxu0 %v481
    %483 = vmatprep.subr.mxu0 0.0
    %v484 = vand.u32 %v44, 4294901760
    %v485 = vsub.f32 %v44, %v484
    %v486 = vand.u32 %v485, 4294901760
    %487 = vmatpush1.msra.mxu0 %v486
    %488 = vmatprep.subr.mxu0 0.0
    %v489 = vand.u32 %v43, 4294901760
    %v490 = vsub.f32 %v43, %v489
    %v491 = vand.u32 %v490, 4294901760
    %492 = vmatpush1.msra.mxu0 %v491
    %493 = vmatprep.subr.mxu0 0.0
    %v494 = vand.u32 %v42, 4294901760
    %v495 = vsub.f32 %v42, %v494
    %v496 = vand.u32 %v495, 4294901760
    %497 = vmatpush1.msra.mxu0 %v496
    %498 = vmatprep.subr.mxu0 0.0
    %499 = vmatpush2.msra.mxu0 0.0
    %500 = vmatprep.subr.mxu0 0.0
    %501 = vmatpush2.msra.mxu0 0.0
    %502 = vmatprep.subr.mxu0 0.0
    %503 = vmatpush2.msra.mxu0 0.0
    %504 = vmatprep.subr.mxu0 0.0
    %505 = vmatpush2.msra.mxu0 0.0
    %506 = vmatprep.subr.mxu0 0.0
    %507 = vmatpush2.msra.mxu0 0.0
    %508 = vmatprep.subr.mxu0 0.0
    %509 = vmatpush2.msra.mxu0 0.0
    %510 = vmatprep.subr.mxu0 0.0
    %511 = vmatpush2.msra.mxu0 0.0
    %512 = vmatprep.subr.mxu0 0.0
    %513 = vmatpush2.msra.mxu0 0.0
    %514 = vmatprep.subr.mxu0 0.0
    %515 = vmatpush2.msra.mxu0 0.0
    %516 = vmatprep.subr.mxu0 0.0
    %517 = vmatpush2.msra.mxu0 0.0
    %518 = vmatprep.subr.mxu0 0.0
    %519 = vmatpush2.msra.mxu0 0.0
    %520 = vmatprep.subr.mxu0 0.0
    %521 = vmatpush2.msra.mxu0 0.0
    %522 = vmatprep.subr.mxu0 0.0
    %523 = vmatpush2.msra.mxu0 0.0
    %524 = vmatprep.subr.mxu0 0.0
    %525 = vmatpush2.msra.mxu0 0.0
    %526 = vmatprep.subr.mxu0 0.0
    %527 = vmatpush2.msra.mxu0 0.0
    %528 = vmatprep.subr.mxu0 0.0
    %529 = vmatpush2.msra.mxu0 0.0
    %530 = vmatprep.mubr.f32.mxu0 0.0
    %v531 = vand.u32 %v51, 4294901760
    %532 = vmatmul.mubr.f32.gmra.mxu0 %v531
    %v533 = vpop.f32.mrf.mxu0
    %v534 = vadd.f32 %v434, %v533
    %v535 = vpop.f32.mrf.mxu0
    %536 = vmatprep.mubr.f32.mxu0 0.0
    %v537 = vand.u32 %v54, 4294901760
    %538 = vmatmul.mubr.f32.gmra.mxu0 %v537
    %v539 = vpop.f32.mrf.mxu0
    %v540 = vadd.f32 %v442, %v539
    %v541 = vpop.f32.mrf.mxu0
    %542 = vdwg.mxu0
    %543 = vmatprep.subr.mxu0 0.0
    %544 = vmatpush1.msra.mxu0 0.0
    %545 = vmatprep.subr.mxu0 0.0
    %546 = vmatpush1.msra.mxu0 0.0
    %547 = vmatprep.subr.mxu0 0.0
    %548 = vmatpush1.msra.mxu0 0.0
    %549 = vmatprep.subr.mxu0 0.0
    %550 = vmatpush1.msra.mxu0 0.0
    %551 = vmatprep.subr.mxu0 0.0
    %552 = vmatpush1.msra.mxu0 0.0
    %553 = vmatprep.subr.mxu0 0.0
    %554 = vmatpush1.msra.mxu0 0.0
    %555 = vmatprep.subr.mxu0 0.0
    %556 = vmatpush1.msra.mxu0 0.0
    %557 = vmatprep.subr.mxu0 0.0
    %558 = vmatpush1.msra.mxu0 0.0
    %559 = vmatprep.subr.mxu0 0.0
    %560 = vmatpush1.msra.mxu0 0.0
    %561 = vmatprep.subr.mxu0 0.0
    %v562 = vand.u32 %v58, 4294901760
    %563 = vmatpush1.msra.mxu0 %v562
    %564 = vmatprep.subr.mxu0 0.0
    %v565 = vand.u32 %v47, 4294901760
    %566 = vmatpush1.msra.mxu0 %v565
    %567 = vmatprep.subr.mxu0 0.0
    %v568 = vand.u32 %v46, 4294901760
    %569 = vmatpush1.msra.mxu0 %v568
    %570 = vmatprep.subr.mxu0 0.0
    %v571 = vand.u32 %v45, 4294901760
    %572 = vmatpush1.msra.mxu0 %v571
    %573 = vmatprep.subr.mxu0 0.0
    %v574 = vand.u32 %v44, 4294901760
    %575 = vmatpush1.msra.mxu0 %v574
    %576 = vmatprep.subr.mxu0 0.0
    %v577 = vand.u32 %v43, 4294901760
    %578 = vmatpush1.msra.mxu0 %v577
    %579 = vmatprep.subr.mxu0 0.0
    %v580 = vand.u32 %v42, 4294901760
    %581 = vmatpush1.msra.mxu0 %v580
    %582 = vmatprep.subr.mxu0 0.0
    %583 = vmatpush2.msra.mxu0 0.0
    %584 = vmatprep.subr.mxu0 0.0
    %585 = vmatpush2.msra.mxu0 0.0
    %586 = vmatprep.subr.mxu0 0.0
    %587 = vmatpush2.msra.mxu0 0.0
    %588 = vmatprep.subr.mxu0 0.0
    %589 = vmatpush2.msra.mxu0 0.0
    %590 = vmatprep.subr.mxu0 0.0
    %591 = vmatpush2.msra.mxu0 0.0
    %592 = vmatprep.subr.mxu0 0.0
    %593 = vmatpush2.msra.mxu0 0.0
    %594 = vmatprep.subr.mxu0 0.0
    %595 = vmatpush2.msra.mxu0 0.0
    %596 = vmatprep.subr.mxu0 0.0
    %597 = vmatpush2.msra.mxu0 0.0
    %598 = vmatprep.subr.mxu0 0.0
    %599 = vmatpush2.msra.mxu0 0.0
    %600 = vmatprep.subr.mxu0 0.0
    %601 = vmatpush2.msra.mxu0 0.0
    %602 = vmatprep.subr.mxu0 0.0
    %603 = vmatpush2.msra.mxu0 0.0
    %604 = vmatprep.subr.mxu0 0.0
    %605 = vmatpush2.msra.mxu0 0.0
    %606 = vmatprep.subr.mxu0 0.0
    %607 = vmatpush2.msra.mxu0 0.0
    %608 = vmatprep.subr.mxu0 0.0
    %609 = vmatpush2.msra.mxu0 0.0
    %610 = vmatprep.subr.mxu0 0.0
    %611 = vmatpush2.msra.mxu0 0.0
    %612 = vmatprep.subr.mxu0 0.0
    %613 = vmatpush2.msra.mxu0 0.0
    %614 = vmatprep.mubr.f32.mxu0 0.0
    %v615 = vand.u32 %v51, 4294901760
    %616 = vmatmul.mubr.f32.gmra.mxu0 %v615
    %v617 = vpop.f32.mrf.mxu0
    %v618 = vadd.f32 %v534, %v617
    %v619 = vpop.f32.mrf.mxu0
    %620 = vmatprep.mubr.f32.mxu0 0.0
    %v621 = vand.u32 %v54, 4294901760
    %622 = vmatmul.mubr.f32.gmra.mxu0 %v621
    %v623 = vpop.f32.mrf.mxu0
    %v624 = vadd.f32 %v540, %v623
    %v625 = vpop.f32.mrf.mxu0
    %626 = vdwg.mxu0
    %627 = vst [vmem:[#allocation5] sm:$0xff] %v618
    %628 = vst [vmem:[#allocation5 + $0x8] sm:$0xff] %v624
    // Predicated region
    $region14: #{pallas_embedding_lookup.1} parent=1 // pred_check
      _
    $region15: #{pallas_embedding_lookup.1} parent=1 // pred_check_branch
      %630 = sbr.rel (0) target = $region17
    $region16: #{pallas_embedding_lookup.1} parent=1 // pred_region
      %s632 = ssub.s32 256, 256
      %633 = vsyncadd [#allocation4], %s632
      %s634 = sshll.u32 [#allocation5], 4
      %s635 = int_to_ptr.vmem [resolvable:$true] %s634
      %640 = dma.vmem_to_hbm [thread:$0]  %s635, 256, %s2, [#allocation4], 128, 128, 8
    $region17: #{pallas_embedding_lookup.1} parent=1 // pred_fallthru
      _
    // Predicated region
    $region18: #{pallas_embedding_lookup.1} parent=1 // pred_check
      _
    $region19: #{pallas_embedding_lookup.1} parent=1 // pred_check_branch
      %642 = sbr.rel (0) target = $region21
    $region20: #{pallas_embedding_lookup.1} parent=1 // pred_region
      %643 = dma.done [#allocation4], 256
    $region21: #{pallas_embedding_lookup.1} parent=1 // pred_fallthru
      _
    %644 = vsyncpa [#allocation3], 1
    %645 = vsyncpa [#allocation4], 1

</llo_original>
